<compile_context>
chip_gen: v5e
topology: v5e:2x2
jax: 0.10.0
libtpu: 0.0.40
codegen_flags: <defaults>
</compile_context>

<pallas_src>
import functools
from typing import NamedTuple

import jax
import jax.numpy as jnp
from jax.experimental import pallas as pl
from jax.experimental.pallas import tpu as pltpu


def _round_up(x, m):
    return ((x + m - 1) // m) * m


# ----------------------------------------------------------------------------
# Parameter prep (hoisted out of the per-forward path)
# ----------------------------------------------------------------------------
class DuelingParams(NamedTuple):
    w1: jax.Array   # [obs_dim, hidden]   (matmul dtype)
    b1: jax.Array   # [1, hidden]         (f32)
    w2: jax.Array   # [hidden, hidden]    (matmul dtype)
    b2: jax.Array   # [1, hidden]         (f32)
    wav: jax.Array  # fused [wa | wv] : [hidden, n_actions + 1] (matmul dtype)
    bav: jax.Array  # fused [ba | bv] : [1, n_actions + 1]      (f32)
    n_actions: int


def prepare_dueling_params(raw_params, matmul_dtype=jnp.bfloat16):
    """Fuse the A/V heads and cast matmul operands ONCE (not per forward)."""
    w1, b1, w2, b2, wa, ba, wv, bv = raw_params
    wav = jnp.concatenate([wa, wv], axis=1)
    bav = jnp.concatenate([ba, bv], axis=1)
    return DuelingParams(
        w1=w1.astype(matmul_dtype), b1=b1.astype(jnp.float32),
        w2=w2.astype(matmul_dtype), b2=b2.astype(jnp.float32),
        wav=wav.astype(matmul_dtype), bav=bav.astype(jnp.float32),
        n_actions=int(wa.shape[1]))


# ----------------------------------------------------------------------------
# Shared in-kernel forward: backbone + fused A|V head (f32 accumulation)
# ----------------------------------------------------------------------------
def _heads(obs_ref, w1_ref, b1_ref, w2_ref, b2_ref, wav_ref, bav_ref, n_actions):
    x = obs_ref[...]
    h1 = jnp.dot(x, w1_ref[...], preferred_element_type=jnp.float32) + b1_ref[...]
    h1 = jnp.maximum(h1, 0.0)
    h2 = jnp.dot(h1.astype(w2_ref.dtype), w2_ref[...],
                 preferred_element_type=jnp.float32) + b2_ref[...]
    h2 = jnp.maximum(h2, 0.0)
    av = jnp.dot(h2.astype(wav_ref.dtype), wav_ref[...],
                 preferred_element_type=jnp.float32) + bav_ref[...]
    a = jnp.maximum(av[:, :n_actions], 0.0)           # A = relu(A_est(x))
    v = av[:, n_actions:n_actions + 1]                 # V = V_est(x), no relu
    return a, v


# dueling_way == 'native': single output (V - A)
def _dueling_native_kernel(obs_ref, w1_ref, b1_ref, w2_ref, b2_ref,
                           wav_ref, bav_ref, out_ref, *, n_actions):
    a, v = _heads(obs_ref, w1_ref, b1_ref, w2_ref, b2_ref, wav_ref, bav_ref,
                  n_actions)
    out_ref[...] = (v - a).astype(out_ref.dtype)


# dueling_way in ('mean', 'avg'): raw V - A plus A (for the global scalar
# reduction done in a trivial XLA epilogue) -- single pass, fully parallel.
def _dueling_raw_kernel(obs_ref, w1_ref, b1_ref, w2_ref, b2_ref,
                        wav_ref, bav_ref, out_ref, a_ref, *, n_actions):
    a, v = _heads(obs_ref, w1_ref, b1_ref, w2_ref, b2_ref, wav_ref, bav_ref,
                  n_actions)
    out_ref[...] = (v - a).astype(out_ref.dtype)
    a_ref[...] = a.astype(a_ref.dtype)


# ----------------------------------------------------------------------------
# Wrapper
# ----------------------------------------------------------------------------
def _per_row_vmem_bytes(obs_dim, hidden, n_actions, matmul_itemsize, n_outputs):
    # Batch-tile-dependent VMEM per row (double-buffered obs & outputs, f32
    # live intermediates h1/h2/av).
    return (2 * obs_dim * matmul_itemsize
            + 2 * n_outputs * n_actions * 4
            + 3 * hidden * 4)


def _auto_block_b(batch, per_row_bytes):
    dyn_budget = 8 << 20   # fits v5e's 16 MiB scoped default & v7x's 64 MiB/TC
    bb = dyn_budget // max(per_row_bytes, 1)
    bb = int(min(bb, 2048, _round_up(batch, 8)))
    return max(8, (bb // 8) * 8)


def dueling_dqn_forward(obs, params, dueling_way, *, block_b=None,
                        matmul_dtype=jnp.bfloat16):
    if dueling_way not in ('native', 'mean', 'avg'):
        raise ValueError(f"unknown dueling_way {dueling_way!r}")
    if not isinstance(params, DuelingParams):
        params = prepare_dueling_params(params, matmul_dtype)

    w1, b1, w2, b2, wav, bav, n_actions = params
    B, obs_dim = obs.shape
    hidden = w1.shape[1]
    mm_dtype = w1.dtype
    itemsize = jnp.dtype(mm_dtype).itemsize
    n_outputs = 1 if dueling_way == 'native' else 2

    per_row = _per_row_vmem_bytes(obs_dim, hidden, n_actions, itemsize, n_outputs)
    if block_b is None:
        block_b = _auto_block_b(B, per_row)
    else:
        block_b = max(8, _round_up(min(block_b, _round_up(B, 8)), 8))

    # obs in the matmul dtype (bf16 by default: halves the dominant HBM read).
    obs_c = obs.astype(mm_dtype)
    b_pad = _round_up(B, block_b)
    if b_pad != B:
        obs_c = jnp.pad(obs_c, ((0, b_pad - B), (0, 0)))
    num_tiles = b_pad // block_b

    weight_operands = (w1, b1, w2, b2, wav, bav)
    w_bytes = sum(int(x.size) * x.dtype.itemsize for x in weight_operands)
    vmem_limit = int(min(64 << 20,
                         max(16 << 20,
                             2 * (w_bytes + block_b * per_row) + (1 << 20))))

    # obs/out blocks advance with the grid; weights/biases are VMEM-resident
    # (constant index_map) with a SINGLE buffer (pl.Buffered(1)) -- no re-DMA.
    in_specs = [pl.BlockSpec((block_b, obs_dim), lambda i: (i, 0))]
    in_specs += [
        pl.BlockSpec(x.shape, lambda i: (0, 0), pipeline_mode=pl.Buffered(1))
        for x in weight_operands
    ]
    out_spec = pl.BlockSpec((block_b, n_actions), lambda i: (i, 0))

    flops = 2 * b_pad * (obs_dim * hidden + hidden * hidden
                         + hidden * (n_actions + 1))
    bytes_accessed = (int(obs_c.size) * obs_c.dtype.itemsize + w_bytes
                      + n_outputs * b_pad * n_actions * 4)
    cost = pl.CostEstimate(flops=flops, transcendentals=0,
                           bytes_accessed=bytes_accessed)
    cparams = pltpu.CompilerParams(dimension_semantics=("parallel",),
                                   vmem_limit_bytes=vmem_limit)

    if dueling_way == 'native':
        out = pl.pallas_call(
            functools.partial(_dueling_native_kernel, n_actions=n_actions),
            out_shape=jax.ShapeDtypeStruct((b_pad, n_actions), jnp.float32),
            grid=(num_tiles,),
            in_specs=in_specs,
            out_specs=out_spec,
            compiler_params=cparams,
            cost_estimate=cost,
        )(obs_c, *weight_operands)
        return out[:B]

    # 'mean' / 'avg': single pass, then a scalar correction epilogue.
    raw, a = pl.pallas_call(
        functools.partial(_dueling_raw_kernel, n_actions=n_actions),
        out_shape=(jax.ShapeDtypeStruct((b_pad, n_actions), jnp.float32),
                   jax.ShapeDtypeStruct((b_pad, n_actions), jnp.float32)),
        grid=(num_tiles,),
        in_specs=in_specs,
        out_specs=(out_spec, out_spec),
        compiler_params=cparams,
        cost_estimate=cost,
    )(obs_c, *weight_operands)
    raw = raw[:B]
    a = a[:B]                      # padded rows excluded from the global stat
    # out = V - (A - stat) = (V - A) + stat   (stat is a GLOBAL scalar)
    stat = jnp.max(a) if dueling_way == 'mean' else jnp.mean(a)
    return raw + stat


# ----------------------------------------------------------------------------
# Pure-JAX reference (for sanity checking)
# ----------------------------------------------------------------------------
def dueling_dqn_ref(obs, raw_params, dueling_way):
    w1, b1, w2, b2, wa, ba, wv, bv = raw_params
    h1 = jnp.maximum(obs @ w1 + b1, 0.0)
    h2 = jnp.maximum(h1 @ w2 + b2, 0.0)
    a = jnp.maximum(h2 @ wa + ba, 0.0)
    v = h2 @ wv + bv
    if dueling_way == 'mean':
        a = a - jnp.max(a)
    elif dueling_way == 'avg':
        a = a - jnp.mean(a)
    return v - a


# ----------------------------------------------------------------------------
# Deterministic parameter init + demo
# ----------------------------------------------------------------------------
def init_params(key, obs_dim, hidden, n_actions):
    ks = jax.random.split(key, 8)

    def lin(kw, kb, fan_in, fan_out):
        bound = 1.0 / jnp.sqrt(fan_in)
        w = jax.random.uniform(kw, (fan_in, fan_out), jnp.float32, -bound, bound)
        b = jax.random.uniform(kb, (1, fan_out), jnp.float32, -bound, bound)
        return w, b

    w1, b1 = lin(ks[0], ks[1], obs_dim, hidden)
    w2, b2 = lin(ks[2], ks[3], hidden, hidden)
    wa, ba = lin(ks[4], ks[5], hidden, n_actions)
    wv, bv = lin(ks[6], ks[7], hidden, 1)
    return (w1, b1, w2, b2, wa, ba, wv, bv)


if __name__ == "__main__":
    key = jax.random.PRNGKey(0)
    k_obs, k_par, k_obs2 = jax.random.split(key, 3)

    obs_dim, hidden, n_actions = 16, 32, 6
    raw_params = init_params(k_par, obs_dim, hidden, n_actions)

    # Hoisted prep: fused [A|V] head + dtype casts done once per dtype.
    prepared_f32 = prepare_dueling_params(raw_params, jnp.float32)
    prepared_bf16 = prepare_dueling_params(raw_params, jnp.bfloat16)

    cases = [
        jax.random.normal(k_obs, (4, obs_dim), jnp.float32),      # tiny batch (padded to 8)
        jax.random.normal(k_obs2, (1000, obs_dim), jnp.float32),  # large single tile
    ]

    ok = True
    for obs in cases:
        for way in ("native", "mean", "avg"):
            ref = dueling_dqn_ref(obs, raw_params, way)

            out_f32 = jax.block_until_ready(
                dueling_dqn_forward(obs, prepared_f32, way))
            if not jnp.allclose(out_f32, ref, atol=1e-4, rtol=1e-4):
                ok = False
                print(f"f32 mismatch: B={obs.shape[0]} dueling_way={way}")

            out_bf16 = jax.block_until_ready(
                dueling_dqn_forward(obs, prepared_bf16, way))
            if not jnp.allclose(out_bf16, ref, atol=5e-2, rtol=5e-2):
                ok = False
                print(f"bf16 mismatch: B={obs.shape[0]} dueling_way={way}")

    if ok:
        print("KERNEL_OK")
</pallas_src>

<mosaic_0001>
module attributes {stable_mosaic.version = 11 : i64} {
  func.func @_dueling_native_kernel(%arg0: i32, %arg1: memref<8x16xf32, #tpu.memory_space<vmem>>, %arg2: memref<16x32xf32, #tpu.memory_space<vmem>>, %arg3: memref<1x32xf32, #tpu.memory_space<vmem>>, %arg4: memref<32x32xf32, #tpu.memory_space<vmem>>, %arg5: memref<1x32xf32, #tpu.memory_space<vmem>>, %arg6: memref<32x7xf32, #tpu.memory_space<vmem>>, %arg7: memref<1x7xf32, #tpu.memory_space<vmem>>, %arg8: memref<8x6xf32, #tpu.memory_space<vmem>>) attributes {dimension_semantics = [#tpu.dimension_semantics<parallel>], iteration_bounds = array<i64: 1>, scalar_prefetch = 0 : i64, scratch_operands = 0 : i64, tpu.core_type = #tpu.core_type<tc>, window_params = [{transform_indices = @transform_0, window_bounds = array<i64: 8, 16>}, {pipeline_mode = #tpu.pipeline_mode<synchronous>, transform_indices = @transform_1, window_bounds = array<i64: 16, 32>}, {pipeline_mode = #tpu.pipeline_mode<synchronous>, transform_indices = @transform_2, window_bounds = array<i64: 1, 32>}, {pipeline_mode = #tpu.pipeline_mode<synchronous>, transform_indices = @transform_3, window_bounds = array<i64: 32, 32>}, {pipeline_mode = #tpu.pipeline_mode<synchronous>, transform_indices = @transform_4, window_bounds = array<i64: 1, 32>}, {pipeline_mode = #tpu.pipeline_mode<synchronous>, transform_indices = @transform_5, window_bounds = array<i64: 32, 7>}, {pipeline_mode = #tpu.pipeline_mode<synchronous>, transform_indices = @transform_6, window_bounds = array<i64: 1, 7>}, {transform_indices = @transform_7, window_bounds = array<i64: 8, 6>}]} {
    %c0 = arith.constant 0 : index
    %c0_0 = arith.constant 0 : index
    %0 = vector.load %arg1[%c0, %c0_0] : memref<8x16xf32, #tpu.memory_space<vmem>>, vector<8x16xf32>
    %c0_1 = arith.constant 0 : index
    %c0_2 = arith.constant 0 : index
    %1 = vector.load %arg2[%c0_1, %c0_2] : memref<16x32xf32, #tpu.memory_space<vmem>>, vector<16x32xf32>
    %cst = arith.constant dense<0.000000e+00> : vector<8x32xf32>
    %2 = tpu.matmul %0, %1, %cst {dimension_numbers = #tpu.dot_dimension_numbers<[1], [0], [0], [1], [0, 0, 1, 1], [], []>} : vector<8x16xf32>, vector<16x32xf32>, vector<8x32xf32> -> vector<8x32xf32>
    %c0_3 = arith.constant 0 : index
    %c0_4 = arith.constant 0 : index
    %3 = vector.load %arg3[%c0_3, %c0_4] : memref<1x32xf32, #tpu.memory_space<vmem>>, vector<1x32xf32>
    %4 = vector.broadcast %3 : vector<1x32xf32> to vector<8x32xf32>
    %5 = arith.addf %2, %4 : vector<8x32xf32>
    %cst_5 = arith.constant 0.000000e+00 : f32
    %6 = vector.broadcast %cst_5 : f32 to vector<8x32xf32>
    %7 = arith.maximumf %5, %6 : vector<8x32xf32>
    %c0_6 = arith.constant 0 : index
    %c0_7 = arith.constant 0 : index
    %8 = vector.load %arg4[%c0_6, %c0_7] : memref<32x32xf32, #tpu.memory_space<vmem>>, vector<32x32xf32>
    %cst_8 = arith.constant dense<0.000000e+00> : vector<8x32xf32>
    %9 = tpu.matmul %7, %8, %cst_8 {dimension_numbers = #tpu.dot_dimension_numbers<[1], [0], [0], [1], [0, 0, 1, 1], [], []>} : vector<8x32xf32>, vector<32x32xf32>, vector<8x32xf32> -> vector<8x32xf32>
    %c0_9 = arith.constant 0 : index
    %c0_10 = arith.constant 0 : index
    %10 = vector.load %arg5[%c0_9, %c0_10] : memref<1x32xf32, #tpu.memory_space<vmem>>, vector<1x32xf32>
    %11 = vector.broadcast %10 : vector<1x32xf32> to vector<8x32xf32>
    %12 = arith.addf %9, %11 : vector<8x32xf32>
    %cst_11 = arith.constant 0.000000e+00 : f32
    %13 = vector.broadcast %cst_11 : f32 to vector<8x32xf32>
    %14 = arith.maximumf %12, %13 : vector<8x32xf32>
    %c0_12 = arith.constant 0 : index
    %c0_13 = arith.constant 0 : index
    %15 = vector.load %arg6[%c0_12, %c0_13] : memref<32x7xf32, #tpu.memory_space<vmem>>, vector<32x7xf32>
    %cst_14 = arith.constant dense<0.000000e+00> : vector<8x7xf32>
    %16 = tpu.matmul %14, %15, %cst_14 {dimension_numbers = #tpu.dot_dimension_numbers<[1], [0], [0], [1], [0, 0, 1, 1], [], []>} : vector<8x32xf32>, vector<32x7xf32>, vector<8x7xf32> -> vector<8x7xf32>
    %c0_15 = arith.constant 0 : index
    %c0_16 = arith.constant 0 : index
    %17 = vector.load %arg7[%c0_15, %c0_16] : memref<1x7xf32, #tpu.memory_space<vmem>>, vector<1x7xf32>
    %18 = vector.broadcast %17 : vector<1x7xf32> to vector<8x7xf32>
    %19 = arith.addf %16, %18 : vector<8x7xf32>
    %20 = vector.extract_strided_slice %19 {offsets = [0, 0], sizes = [8, 6], strides = [1, 1]} : vector<8x7xf32> to vector<8x6xf32>
    %cst_17 = arith.constant 0.000000e+00 : f32
    %21 = vector.broadcast %cst_17 : f32 to vector<8x6xf32>
    %22 = arith.maximumf %20, %21 : vector<8x6xf32>
    %23 = vector.extract_strided_slice %19 {offsets = [0, 6], sizes = [8, 1], strides = [1, 1]} : vector<8x7xf32> to vector<8x1xf32>
    %24 = vector.broadcast %23 : vector<8x1xf32> to vector<8x6xf32>
    %25 = arith.subf %24, %22 : vector<8x6xf32>
    %c0_18 = arith.constant 0 : index
    %c0_19 = arith.constant 0 : index
    %26 = vector.load %arg8[%c0_18, %c0_19] : memref<8x6xf32, #tpu.memory_space<vmem>>, vector<8x6xf32>
    tpu.vector_store %arg8[%c0_18, %c0_19], %25 {strides = array<i32>} : memref<8x6xf32, #tpu.memory_space<vmem>>, vector<8x6xf32>,
    return
  }
  func.func @transform_0(%arg0: i32) -> (i32, i32) {
    %c0_i32 = arith.constant 0 : i32
    %c0_i32_0 = arith.constant 0 : i32
    return %arg0, %c0_i32 : i32, i32
  }
  func.func @transform_1(%arg0: i32) -> (i32, i32) {
    %c0_i32 = arith.constant 0 : i32
    %c0_i32_0 = arith.constant 0 : i32
    %c0_i32_1 = arith.constant 0 : i32
    return %c0_i32, %c0_i32_0 : i32, i32
  }
  func.func @transform_2(%arg0: i32) -> (i32, i32) {
    %c0_i32 = arith.constant 0 : i32
    %c0_i32_0 = arith.constant 0 : i32
    %c0_i32_1 = arith.constant 0 : i32
    return %c0_i32, %c0_i32_0 : i32, i32
  }
  func.func @transform_3(%arg0: i32) -> (i32, i32) {
    %c0_i32 = arith.constant 0 : i32
    %c0_i32_0 = arith.constant 0 : i32
    %c0_i32_1 = arith.constant 0 : i32
    return %c0_i32, %c0_i32_0 : i32, i32
  }
  func.func @transform_4(%arg0: i32) -> (i32, i32) {
    %c0_i32 = arith.constant 0 : i32
    %c0_i32_0 = arith.constant 0 : i32
    %c0_i32_1 = arith.constant 0 : i32
    return %c0_i32, %c0_i32_0 : i32, i32
  }
  func.func @transform_5(%arg0: i32) -> (i32, i32) {
    %c0_i32 = arith.constant 0 : i32
    %c0_i32_0 = arith.constant 0 : i32
    %c0_i32_1 = arith.constant 0 : i32
    return %c0_i32, %c0_i32_0 : i32, i32
  }
  func.func @transform_6(%arg0: i32) -> (i32, i32) {
    %c0_i32 = arith.constant 0 : i32
    %c0_i32_0 = arith.constant 0 : i32
    %c0_i32_1 = arith.constant 0 : i32
    return %c0_i32, %c0_i32_0 : i32, i32
  }
  func.func @transform_7(%arg0: i32) -> (i32, i32) {
    %c0_i32 = arith.constant 0 : i32
    %c0_i32_0 = arith.constant 0 : i32
    return %arg0, %c0_i32 : i32, i32
  }
}

</mosaic_0001>

<llo_original>
// kernel: tpu_custom_call.1
$region0: #{tpu_custom_call.1}
  #allocation0 [shape = 'u32[]', space=smem, size = 0x4, offset = 0x4, fixed_abs, tag = 'smem constant byte address 0x4 - core index']
  #allocation1 [shape = 'u32[72,128]{1,0:T(1,128)}', space=vmem, size = 0x9000, scoped, tag = 'internal scratch']
  %s0 = inlined_call_operand.vmem [shape: f32[8,16], index: 0, kind: input, shape index: {}]
  %s1 = inlined_call_operand.hbm [shape: f32[16,32], index: 1, kind: input, shape index: {}]
  %s2 = inlined_call_operand.vmem [shape: f32[1,32], index: 2, kind: input, shape index: {}]
  %s3 = inlined_call_operand.vmem [shape: f32[32,32], index: 3, kind: input, shape index: {}]
  %s4 = inlined_call_operand.vmem [shape: f32[1,32], index: 4, kind: input, shape index: {}]
  %s5 = inlined_call_operand.vmem [shape: f32[32,7], index: 5, kind: input, shape index: {}]
  %s6 = inlined_call_operand.vmem [shape: f32[1,7], index: 6, kind: input, shape index: {}]
  %s7 = inlined_call_operand.hbm [shape: f32[8,6], index: 7, kind: output, shape index: {}]
  %s8 = sld [smem:[#allocation0]]
  $region42: #{tpu_custom_call.1} parent=0
    _
  %s10 = ssub.s32 1, %s8
  %s11 = scalar_select 0, %s10, %s8
  $region1: #{tpu_custom_call.1} parent=0
    #allocation2 [shape = 'u8[8192]{0}', space=vmem, size = 0x2000, scoped, tag = 'input window, operand 1, single buffered']
    #allocation3 [shape = 's32[1]{0}', space=sflag, size = 0x4, scoped, tag = 'scoped memory for tpu_custom_call.1']
    #allocation4 [shape = 's32[1]{0}', space=sflag, size = 0x4, scoped, tag = 'scoped memory for tpu_custom_call.1']
    #allocation5 [shape = 'u8[4096]{0}', space=vmem, size = 0x1000, scoped, tag = 'output window, operand 0, single buffered']
    %12 = vsyncpa [#allocation3], 0
    %13 = vsyncpa [#allocation4], 0
    // Predicated region
    $region2: #{tpu_custom_call.1} parent=1 // pred_check
      _
    $region3: #{tpu_custom_call.1} parent=1 // pred_check_branch
      %15 = sbr.rel (0) target = $region5
    $region4: #{tpu_custom_call.1} parent=1 // pred_region
      _
    $region5: #{tpu_custom_call.1} parent=1 // pred_fallthru
      _
    // Predicated region
    $region6: #{tpu_custom_call.1} parent=1 // pred_check
      _
    $region7: #{tpu_custom_call.1} parent=1 // pred_check_branch
      %17 = sbr.rel (0) target = $region9
    $region8: #{tpu_custom_call.1} parent=1 // pred_region
      %19 = vsyncadd [#allocation3], 0
      %s20 = sshll.u32 %s1, 4
      %s21 = int_to_ptr.hbm [resolvable:$true] %s20
      %s22 = sshll.u32 [#allocation2], 4
      %s23 = int_to_ptr.vmem [resolvable:$true] %s22
      %28 = dma.hbm_to_vmem [thread:$0]  %s21, 256, %s23, [#allocation3], 128, 128, 8
    $region9: #{tpu_custom_call.1} parent=1 // pred_fallthru
      _
    // Predicated region
    $region10: #{tpu_custom_call.1} parent=1 // pred_check
      _
    $region11: #{tpu_custom_call.1} parent=1 // pred_check_branch
      %30 = sbr.rel (0) target = $region13
    $region12: #{tpu_custom_call.1} parent=1 // pred_region
      _
    $region13: #{tpu_custom_call.1} parent=1 // pred_fallthru
      _
    // Predicated region
    $region14: #{tpu_custom_call.1} parent=1 // pred_check
      _
    $region15: #{tpu_custom_call.1} parent=1 // pred_check_branch
      %32 = sbr.rel (0) target = $region17
    $region16: #{tpu_custom_call.1} parent=1 // pred_region
      _
    $region17: #{tpu_custom_call.1} parent=1 // pred_fallthru
      _
    // Predicated region
    $region18: #{tpu_custom_call.1} parent=1 // pred_check
      _
    $region19: #{tpu_custom_call.1} parent=1 // pred_check_branch
      %34 = sbr.rel (0) target = $region21
    $region20: #{tpu_custom_call.1} parent=1 // pred_region
      _
    $region21: #{tpu_custom_call.1} parent=1 // pred_fallthru
      _
    // Predicated region
    $region22: #{tpu_custom_call.1} parent=1 // pred_check
      _
    $region23: #{tpu_custom_call.1} parent=1 // pred_check_branch
      %36 = sbr.rel (0) target = $region25
    $region24: #{tpu_custom_call.1} parent=1 // pred_region
      _
    $region25: #{tpu_custom_call.1} parent=1 // pred_fallthru
      _
    // Predicated region
    $region26: #{tpu_custom_call.1} parent=1 // pred_check
      _
    $region27: #{tpu_custom_call.1} parent=1 // pred_check_branch
      %38 = sbr.rel (0) target = $region29
    $region28: #{tpu_custom_call.1} parent=1 // pred_region
      _
    $region29: #{tpu_custom_call.1} parent=1 // pred_fallthru
      _
    // Predicated region
    $region30: #{tpu_custom_call.1} parent=1 // pred_check
      _
    $region31: #{tpu_custom_call.1} parent=1 // pred_check_branch
      %40 = sbr.rel (0) target = $region33
    $region32: #{tpu_custom_call.1} parent=1 // pred_region
      %42 = dma.done [#allocation3], 256
    $region33: #{tpu_custom_call.1} parent=1 // pred_fallthru
      _
    %v43 = vld [vmem:[%s0] sm:$0xff]
    %v44 = vld [vmem:[#allocation2] sm:$0xff]
    %v45 = vld [vmem:[#allocation2 + $0x8] sm:$0xff]
    %v46 = vld [vmem:[%s2] sm:$0x1]
    %v48 = vperm.slane %v46, 0
    %vm50 = vcmask 130048
    %v52 = vsel %vm50, %v43, 0
    %54 = vmatpush.msra.mxu0 0.0
    %55 = vmatpush.msra.mxu0 0.0
    %56 = vmatpush.msra.mxu0 0.0
    %57 = vmatpush.msra.mxu0 0.0
    %58 = vmatpush.msra.mxu0 0.0
    %59 = vmatpush.msra.mxu0 0.0
    %60 = vmatpush.msra.mxu0 0.0
    %61 = vmatpush.msra.mxu0 0.0
    %62 = vmatpush.msra.mxu0 0.0
    %63 = vmatpush.msra.mxu0 0.0
    %64 = vmatpush.msra.mxu0 0.0
    %65 = vmatpush.msra.mxu0 0.0
    %66 = vmatpush.msra.mxu0 0.0
    %67 = vmatpush.msra.mxu0 0.0
    %68 = vmatpush.msra.mxu0 %v45
    %69 = vmatpush.msra.mxu0 %v44
    %70 = vmatmul.f32.gmra.mxu0 %v52
    %v71 = vpop.f32.mrf.mxu0
    %v72 = vadd.f32 %v48, %v71
    %73 = vdwg.mxu0
    %v74 = vmax.f32 %v72, 0.0
    %v75 = vld [vmem:[%s3] sm:$0xff]
    %v76 = vld [vmem:[%s3 + $0x8] sm:$0xff]
    %v77 = vld [vmem:[%s3 + $0x10] sm:$0xff]
    %v78 = vld [vmem:[%s3 + $0x18] sm:$0xff]
    %v79 = vld [vmem:[%s4] sm:$0x1]
    %v81 = vperm.slane %v79, 0
    %vm83 = vcmask 261120
    %v85 = vsel %vm83, %v74, 0
    %87 = vmatpush.msra.mxu0 0.0
    %88 = vmatpush.msra.mxu0 0.0
    %89 = vmatpush.msra.mxu0 0.0
    %90 = vmatpush.msra.mxu0 0.0
    %91 = vmatpush.msra.mxu0 0.0
    %92 = vmatpush.msra.mxu0 0.0
    %93 = vmatpush.msra.mxu0 0.0
    %94 = vmatpush.msra.mxu0 0.0
    %95 = vmatpush.msra.mxu0 0.0
    %96 = vmatpush.msra.mxu0 0.0
    %97 = vmatpush.msra.mxu0 0.0
    %98 = vmatpush.msra.mxu0 0.0
    %99 = vmatpush.msra.mxu0 %v78
    %100 = vmatpush.msra.mxu0 %v77
    %101 = vmatpush.msra.mxu0 %v76
    %102 = vmatpush.msra.mxu0 %v75
    %103 = vmatmul.f32.gmra.mxu0 %v85
    %v104 = vpop.f32.mrf.mxu0
    %v105 = vadd.f32 %v81, %v104
    %106 = vdwg.mxu0
    %v107 = vmax.f32 %v105, 0.0
    %v108 = vld [vmem:[%s5] sm:$0xff]
    %v109 = vld [vmem:[%s5 + $0x8] sm:$0xff]
    %v110 = vld [vmem:[%s5 + $0x10] sm:$0xff]
    %v111 = vld [vmem:[%s5 + $0x18] sm:$0xff]
    %v112 = vld [vmem:[%s6] sm:$0x1]
    %v114 = vperm.slane %v112, 0
    %v117 = vsel %vm83, %v107, 0
    %119 = vmatpush.msra.mxu0 0.0
    %120 = vmatpush.msra.mxu0 0.0
    %121 = vmatpush.msra.mxu0 0.0
    %122 = vmatpush.msra.mxu0 0.0
    %123 = vmatpush.msra.mxu0 0.0
    %124 = vmatpush.msra.mxu0 0.0
    %125 = vmatpush.msra.mxu0 0.0
    %126 = vmatpush.msra.mxu0 0.0
    %127 = vmatpush.msra.mxu0 0.0
    %128 = vmatpush.msra.mxu0 0.0
    %129 = vmatpush.msra.mxu0 0.0
    %130 = vmatpush.msra.mxu0 0.0
    %131 = vmatpush.msra.mxu0 %v111
    %132 = vmatpush.msra.mxu0 %v110
    %133 = vmatpush.msra.mxu0 %v109
    %134 = vmatpush.msra.mxu0 %v108
    %135 = vmatmul.f32.gmra.mxu0 %v117
    %v136 = vpop.f32.mrf.mxu0
    %v137 = vadd.f32 %v114, %v136
    %138 = vdwg.mxu0
    %v139 = vmax.f32 %v137, 0.0
    %141 = vset.pattern.permute.xlu0 6
    %142 = vperm.xlu0 %141, %v137
    %v143 = vpop.permute.xlu0 %142
    %v145 = vsub.f32 %v143, %v139
    %vm146 = vcmask 48128
    %147 = vst.msk [vmem:[#allocation5] sm:$0xff] %vm146, %v145
    // Predicated region
    $region34: #{tpu_custom_call.1} parent=1 // pred_check
      _
    $region35: #{tpu_custom_call.1} parent=1 // pred_check_branch
      %149 = sbr.rel (0) target = $region37
    $region36: #{tpu_custom_call.1} parent=1 // pred_region
      %151 = vsyncadd [#allocation4], 0
      %s153 = sshll.u32 [#allocation5], 4
      %s154 = int_to_ptr.vmem [resolvable:$true] %s153
      %s155 = sshll.u32 %s7, 4
      %s156 = int_to_ptr.hbm [resolvable:$true] %s155
      %158 = dma.vmem_to_hbm [thread:$0]  %s154, 128, %s156, [#allocation4]
    $region37: #{tpu_custom_call.1} parent=1 // pred_fallthru
      _
    // Predicated region
    $region38: #{tpu_custom_call.1} parent=1 // pred_check
      _
    $region39: #{tpu_custom_call.1} parent=1 // pred_check_branch
      %160 = sbr.rel (0) target = $region41
    $region40: #{tpu_custom_call.1} parent=1 // pred_region
      %162 = dma.done [#allocation4], 128
    $region41: #{tpu_custom_call.1} parent=1 // pred_fallthru
      _
    %163 = vsyncpa [#allocation3], 1
    %164 = vsyncpa [#allocation4], 1

</llo_original>
